<compile_context>
chip_gen: v7x
topology: tpu7x:2x2x1
jax: 0.10.0
libtpu: 0.0.40
codegen_flags: <defaults>
</compile_context>

<pallas_src>
from functools import partial

import jax
import jax.numpy as jnp
from jax.experimental import pallas as pl
from jax.experimental.pallas import tpu as pltpu


def attention_kernel(x_ref, nbp_ref, wqkv_ref, wout_ref, o_ref, *,
                     blk, seq_len, heads, dim_head):
    """One grid step processes `blk` batch elements (blk*N tokens).

    x_ref    : (blk*N, D)        activations (original dtype)
    nbp_ref  : (3, D) f32        [gamma, beta, b_out]
    wqkv_ref : (D, 3*inner) bf16 QKV weights, attention scale folded into Q cols
    wout_ref : (inner, D) bf16   output projection weights
    o_ref    : (blk*N, D)        output
    """
    H, dh, N = heads, dim_head, seq_len
    inner = H * dh

    gamma = nbp_ref[0]                                       # (D,)
    beta = nbp_ref[1]
    b_out = nbp_ref[2]

    # --- LayerNorm (eps=1e-5, affine) over all blk*N tokens, f32 math ---
    x = x_ref[...].astype(jnp.float32)                       # (blk*N, D)
    mean = jnp.mean(x, axis=-1, keepdims=True)
    var = jnp.mean((x - mean) ** 2, axis=-1, keepdims=True)
    xn = (x - mean) * jax.lax.rsqrt(var + 1e-5)
    xn = xn * gamma + beta                                   # (blk*N, D) f32

    # --- single fused QKV projection on the MXU (scale already in Q weights) ---
    qkv = jnp.dot(xn.astype(jnp.bfloat16), wqkv_ref[...],
                  preferred_element_type=jnp.float32)        # (blk*N, 3*inner) f32

    # --- per batch element: multi-head attention + fused output projection ---
    for b in range(blk):
        qkv_b = qkv[b * N:(b + 1) * N]                       # (N, 3*inner), static slice
        head_outs = []
        for h in range(H):
            q_h = qkv_b[:, h * dh:(h + 1) * dh].astype(jnp.bfloat16)
            k_h = qkv_b[:, inner + h * dh:inner + (h + 1) * dh].astype(jnp.bfloat16)
            v_h = qkv_b[:, 2 * inner + h * dh:2 * inner + (h + 1) * dh].astype(jnp.bfloat16)

            dots = jnp.dot(q_h, k_h.T,
                           preferred_element_type=jnp.float32)      # (N, N) f32
            dots = dots - jnp.max(dots, axis=-1, keepdims=True)
            e = jnp.exp(dots)
            inv = pl.reciprocal(jnp.sum(e, axis=-1, keepdims=True), approx=True)
            attn = (e * inv).astype(jnp.bfloat16)                   # (N, N)
            # TODO(synk): dropout is a no-op here (p=0.0 / eval mode).
            head_outs.append(jnp.dot(attn, v_h,
                                     preferred_element_type=jnp.float32))  # (N, dh)

        out_b = head_outs[0] if H == 1 else jnp.concatenate(head_outs, axis=-1)

        # --- single fused output projection: (N, inner) @ (inner, D) + b ---
        proj = jnp.dot(out_b.astype(jnp.bfloat16), wout_ref[...],
                       preferred_element_type=jnp.float32) + b_out  # (N, D) f32
        o_ref[b * N:(b + 1) * N, :] = proj.astype(o_ref.dtype)


def prepare_attention_params(gamma, beta, w_qkv, w_out, b_out, *, heads, dim_head):
    """One-time host-side parameter re-layout (call at model init, not per step)."""
    D = w_qkv.shape[0]
    inner = heads * dim_head
    scale = dim_head ** -0.5
    norm_pack = jnp.concatenate(
        [jnp.reshape(gamma, (1, D)),
         jnp.reshape(beta, (1, D)),
         jnp.reshape(b_out, (1, D))], axis=0).astype(jnp.float32)      # (3, D)
    # Fold the attention scale into the Q columns; cast once to bf16.
    w_qkv_p = (w_qkv.astype(jnp.float32)
               .at[:, :inner].multiply(scale)
               .astype(jnp.bfloat16))                                  # (D, 3*inner)
    w_out_p = w_out.astype(jnp.bfloat16)                               # (inner, D)
    return norm_pack, w_qkv_p, w_out_p


def _default_batch_block(batch):
    # Dual-TensorCore chips (v7x): one batch element per grid step so the
    # "parallel" batch axis maps across both cores.  Single-TC v5e/v6e: fold
    # the whole batch into one grid step (halves fixed per-step overhead).
    try:
        kind = jax.devices()[0].device_kind.lower()
    except Exception:
        return batch
    return 1 if "v7" in kind else batch


def attention_forward(x, norm_pack, w_qkv_p, w_out_p, *, heads, dim_head,
                      batch_block=None):
    """x: (B, N, D); params from prepare_attention_params()."""
    B, N, D = x.shape
    inner = heads * dim_head
    if batch_block is None:
        batch_block = _default_batch_block(B)
    assert B % batch_block == 0
    grid = (B // batch_block,)

    x2 = x.reshape(B * N, D)                                 # free host-side reshape
    kern = partial(attention_kernel, blk=batch_block, seq_len=N,
                   heads=heads, dim_head=dim_head)
    out2 = pl.pallas_call(
        kern,
        out_shape=jax.ShapeDtypeStruct((B * N, D), x.dtype),
        grid=grid,
        in_specs=[
            pl.BlockSpec((batch_block * N, D), lambda i: (i, 0)),   # x
            pl.BlockSpec((3, D), lambda i: (0, 0)),                 # gamma/beta/b_out
            pl.BlockSpec((D, 3 * inner), lambda i: (0, 0)),         # W_qkv
            pl.BlockSpec((inner, D), lambda i: (0, 0)),             # W_out
        ],
        out_specs=pl.BlockSpec((batch_block * N, D), lambda i: (i, 0)),
        compiler_params=pltpu.CompilerParams(
            dimension_semantics=("parallel",)),
    )(x2, norm_pack, w_qkv_p, w_out_p)
    return out2.reshape(B, N, D)


def reference_attention(x, gamma, beta, w_qkv, w_out, b_out, *, heads, dim_head):
    """Pure-JAX f32 reference (matches the PyTorch module)."""
    B, N, D = x.shape
    inner = heads * dim_head
    scale = dim_head ** -0.5
    mean = jnp.mean(x, axis=-1, keepdims=True)
    var = jnp.mean((x - mean) ** 2, axis=-1, keepdims=True)
    xn = (x - mean) / jnp.sqrt(var + 1e-5) * gamma[0] + beta[0]
    qkv = xn @ w_qkv                                         # (B, N, 3*inner)
    q, k, v = jnp.split(qkv, 3, axis=-1)

    def to_heads(t):
        return t.reshape(B, N, heads, dim_head).transpose(0, 2, 1, 3)

    q, k, v = map(to_heads, (q, k, v))                       # (B, H, N, dh)
    dots = jnp.einsum("bhnd,bhmd->bhnm", q, k) * scale
    attn = jax.nn.softmax(dots, axis=-1)
    out = jnp.einsum("bhnm,bhmd->bhnd", attn, v)
    out = out.transpose(0, 2, 1, 3).reshape(B, N, inner)
    return out @ w_out + b_out[0]


if __name__ == "__main__":
    # Small shapes consistent with the module: dim=32, heads=2, dim_head=16.
    B, N, D = 2, 8, 32
    heads, dim_head = 2, 16
    inner = heads * dim_head

    key = jax.random.PRNGKey(0)
    k_x, k_qkv, k_out, k_b = jax.random.split(key, 4)

    x = jax.random.normal(k_x, (B, N, D), dtype=jnp.float32)

    # Deterministic parameter init (shapes from the PyTorch module's __init__).
    gamma = jnp.ones((1, D), dtype=jnp.float32)              # LayerNorm weight
    beta = jnp.zeros((1, D), dtype=jnp.float32)              # LayerNorm bias
    # nn.Linear stores (out, in); we keep the x @ W ("pre-transposed") layout.
    w_qkv = jax.random.normal(k_qkv, (D, 3 * inner), dtype=jnp.float32) * 0.05
    w_out = jax.random.normal(k_out, (inner, D), dtype=jnp.float32) * 0.05
    b_out = jax.random.normal(k_b, (1, D), dtype=jnp.float32) * 0.05

    # One-time weight re-layout (hoisted out of the per-call path).
    norm_pack, w_qkv_p, w_out_p = prepare_attention_params(
        gamma, beta, w_qkv, w_out, b_out, heads=heads, dim_head=dim_head)

    y = attention_forward(x, norm_pack, w_qkv_p, w_out_p,
                          heads=heads, dim_head=dim_head)
    y = jax.block_until_ready(y)

    y_ref = reference_attention(x, gamma, beta, w_qkv, w_out, b_out,
                                heads=heads, dim_head=dim_head)
    assert y.shape == (B, N, D)
    max_err = float(jnp.max(jnp.abs(y - y_ref)))
    # bf16 MXU operands with f32 accumulation -> loosened tolerance.
    assert jnp.allclose(y, y_ref, atol=2e-2, rtol=2e-2), \
        f"mismatch vs reference (max abs err {max_err})"

    print("KERNEL_OK")
</pallas_src>

<mosaic_0001>
module attributes {stable_mosaic.version = 11 : i64} {
  func.func @attention_kernel(%arg0: i32, %arg1: memref<16x32xf32, #tpu.memory_space<vmem>>, %arg2: memref<3x32xf32, #tpu.memory_space<vmem>>, %arg3: memref<32x96xbf16, #tpu.memory_space<vmem>>, %arg4: memref<32x32xbf16, #tpu.memory_space<vmem>>, %arg5: memref<16x32xf32, #tpu.memory_space<vmem>>) attributes {dimension_semantics = [#tpu.dimension_semantics<parallel>], iteration_bounds = array<i64: 1>, scalar_prefetch = 0 : i64, scratch_operands = 0 : i64, tpu.core_type = #tpu.core_type<tc>, window_params = [{transform_indices = @transform_0, window_bounds = array<i64: 16, 32>}, {pipeline_mode = #tpu.pipeline_mode<synchronous>, transform_indices = @transform_1, window_bounds = array<i64: 3, 32>}, {pipeline_mode = #tpu.pipeline_mode<synchronous>, transform_indices = @transform_2, window_bounds = array<i64: 32, 96>}, {pipeline_mode = #tpu.pipeline_mode<synchronous>, transform_indices = @transform_3, window_bounds = array<i64: 32, 32>}, {transform_indices = @transform_4, window_bounds = array<i64: 16, 32>}]} {
    %c0 = arith.constant 0 : index
    %c0_0 = arith.constant 0 : index
    %0 = vector.load %arg2[%c0, %c0_0] : memref<3x32xf32, #tpu.memory_space<vmem>>, vector<1x32xf32>
    %1 = vector.shape_cast %0 : vector<1x32xf32> to vector<32xf32>
    %c1 = arith.constant 1 : index
    %c0_1 = arith.constant 0 : index
    %2 = vector.load %arg2[%c1, %c0_1] : memref<3x32xf32, #tpu.memory_space<vmem>>, vector<1x32xf32>
    %3 = vector.shape_cast %2 : vector<1x32xf32> to vector<32xf32>
    %c2 = arith.constant 2 : index
    %c0_2 = arith.constant 0 : index
    %4 = vector.load %arg2[%c2, %c0_2] : memref<3x32xf32, #tpu.memory_space<vmem>>, vector<1x32xf32>
    %5 = vector.shape_cast %4 : vector<1x32xf32> to vector<32xf32>
    %c0_3 = arith.constant 0 : index
    %c0_4 = arith.constant 0 : index
    %6 = vector.load %arg1[%c0_3, %c0_4] : memref<16x32xf32, #tpu.memory_space<vmem>>, vector<16x32xf32>
    %cst = arith.constant dense<0.000000e+00> : vector<16xf32>
    %7 = vector.multi_reduction <add>, %6, %cst [1] : vector<16x32xf32> to vector<16xf32>
    %8 = vector.shape_cast %7 : vector<16xf32> to vector<16x1xf32>
    %cst_5 = arith.constant 3.200000e+01 : f32
    %9 = vector.broadcast %cst_5 : f32 to vector<16x1xf32>
    %10 = arith.divf %8, %9 : vector<16x1xf32>
    %11 = vector.broadcast %10 : vector<16x1xf32> to vector<16x32xf32>
    %12 = arith.subf %6, %11 : vector<16x32xf32>
    %13 = arith.mulf %12, %12 : vector<16x32xf32>
    %cst_6 = arith.constant dense<0.000000e+00> : vector<16xf32>
    %14 = vector.multi_reduction <add>, %13, %cst_6 [1] : vector<16x32xf32> to vector<16xf32>
    %15 = vector.shape_cast %14 : vector<16xf32> to vector<16x1xf32>
    %cst_7 = arith.constant 3.200000e+01 : f32
    %16 = vector.broadcast %cst_7 : f32 to vector<16x1xf32>
    %17 = arith.divf %15, %16 : vector<16x1xf32>
    %18 = vector.broadcast %10 : vector<16x1xf32> to vector<16x32xf32>
    %19 = arith.subf %6, %18 : vector<16x32xf32>
    %cst_8 = arith.constant 9.99999974E-6 : f32
    %20 = vector.broadcast %cst_8 : f32 to vector<16x1xf32>
    %21 = arith.addf %17, %20 : vector<16x1xf32>
    %22 = math.rsqrt %21 : vector<16x1xf32>
    %23 = vector.broadcast %22 : vector<16x1xf32> to vector<16x32xf32>
    %24 = arith.mulf %19, %23 : vector<16x32xf32>
    %25 = vector.shape_cast %1 : vector<32xf32> to vector<1x32xf32>
    %26 = vector.broadcast %25 : vector<1x32xf32> to vector<16x32xf32>
    %27 = arith.mulf %24, %26 : vector<16x32xf32>
    %28 = vector.shape_cast %3 : vector<32xf32> to vector<1x32xf32>
    %29 = vector.broadcast %28 : vector<1x32xf32> to vector<16x32xf32>
    %30 = arith.addf %27, %29 : vector<16x32xf32>
    %31 = arith.truncf %30 : vector<16x32xf32> to vector<16x32xbf16>
    %c0_9 = arith.constant 0 : index
    %c0_10 = arith.constant 0 : index
    %32 = vector.load %arg3[%c0_9, %c0_10] : memref<32x96xbf16, #tpu.memory_space<vmem>>, vector<32x96xbf16>
    %cst_11 = arith.constant dense<0.000000e+00> : vector<16x96xf32>
    %33 = tpu.matmul %31, %32, %cst_11 {dimension_numbers = #tpu.dot_dimension_numbers<[1], [0], [0], [1], [0, 0, 1, 1], [], []>} : vector<16x32xbf16>, vector<32x96xbf16>, vector<16x96xf32> -> vector<16x96xf32>
    %34 = vector.extract_strided_slice %33 {offsets = [0, 0], sizes = [8, 96], strides = [1, 1]} : vector<16x96xf32> to vector<8x96xf32>
    %35 = vector.extract_strided_slice %34 {offsets = [0, 0], sizes = [8, 16], strides = [1, 1]} : vector<8x96xf32> to vector<8x16xf32>
    %36 = arith.truncf %35 : vector<8x16xf32> to vector<8x16xbf16>
    %37 = vector.extract_strided_slice %34 {offsets = [0, 32], sizes = [8, 16], strides = [1, 1]} : vector<8x96xf32> to vector<8x16xf32>
    %38 = arith.truncf %37 : vector<8x16xf32> to vector<8x16xbf16>
    %39 = vector.extract_strided_slice %34 {offsets = [0, 64], sizes = [8, 16], strides = [1, 1]} : vector<8x96xf32> to vector<8x16xf32>
    %40 = arith.truncf %39 : vector<8x16xf32> to vector<8x16xbf16>
    %41 = tpu.transpose %38, [1, 0] : vector<8x16xbf16> -> vector<16x8xbf16>
    %cst_12 = arith.constant dense<0.000000e+00> : vector<8x8xf32>
    %42 = tpu.matmul %36, %41, %cst_12 {dimension_numbers = #tpu.dot_dimension_numbers<[1], [0], [0], [1], [0, 0, 1, 1], [], []>} : vector<8x16xbf16>, vector<16x8xbf16>, vector<8x8xf32> -> vector<8x8xf32>
    %cst_13 = arith.constant dense<0xFF800000> : vector<8xf32>
    %43 = vector.multi_reduction <maximumf>, %42, %cst_13 [1] : vector<8x8xf32> to vector<8xf32>
    %44 = vector.shape_cast %43 : vector<8xf32> to vector<8x1xf32>
    %45 = vector.broadcast %44 : vector<8x1xf32> to vector<8x8xf32>
    %46 = arith.subf %42, %45 : vector<8x8xf32>
    %47 = math.exp %46 : vector<8x8xf32>
    %cst_14 = arith.constant dense<0.000000e+00> : vector<8xf32>
    %48 = vector.multi_reduction <add>, %47, %cst_14 [1] : vector<8x8xf32> to vector<8xf32>
    %49 = vector.shape_cast %48 : vector<8xf32> to vector<8x1xf32>
    %50 = tpu.reciprocal %49 {approx = true} : vector<8x1xf32> -> vector<8x1xf32>
    %51 = vector.broadcast %50 : vector<8x1xf32> to vector<8x8xf32>
    %52 = arith.mulf %47, %51 : vector<8x8xf32>
    %53 = arith.truncf %52 : vector<8x8xf32> to vector<8x8xbf16>
    %cst_15 = arith.constant dense<0.000000e+00> : vector<8x16xf32>
    %54 = tpu.matmul %53, %40, %cst_15 {dimension_numbers = #tpu.dot_dimension_numbers<[1], [0], [0], [1], [0, 0, 1, 1], [], []>} : vector<8x8xbf16>, vector<8x16xbf16>, vector<8x16xf32> -> vector<8x16xf32>
    %55 = vector.extract_strided_slice %34 {offsets = [0, 16], sizes = [8, 16], strides = [1, 1]} : vector<8x96xf32> to vector<8x16xf32>
    %56 = arith.truncf %55 : vector<8x16xf32> to vector<8x16xbf16>
    %57 = vector.extract_strided_slice %34 {offsets = [0, 48], sizes = [8, 16], strides = [1, 1]} : vector<8x96xf32> to vector<8x16xf32>
    %58 = arith.truncf %57 : vector<8x16xf32> to vector<8x16xbf16>
    %59 = vector.extract_strided_slice %34 {offsets = [0, 80], sizes = [8, 16], strides = [1, 1]} : vector<8x96xf32> to vector<8x16xf32>
    %60 = arith.truncf %59 : vector<8x16xf32> to vector<8x16xbf16>
    %61 = tpu.transpose %58, [1, 0] : vector<8x16xbf16> -> vector<16x8xbf16>
    %cst_16 = arith.constant dense<0.000000e+00> : vector<8x8xf32>
    %62 = tpu.matmul %56, %61, %cst_16 {dimension_numbers = #tpu.dot_dimension_numbers<[1], [0], [0], [1], [0, 0, 1, 1], [], []>} : vector<8x16xbf16>, vector<16x8xbf16>, vector<8x8xf32> -> vector<8x8xf32>
    %cst_17 = arith.constant dense<0xFF800000> : vector<8xf32>
    %63 = vector.multi_reduction <maximumf>, %62, %cst_17 [1] : vector<8x8xf32> to vector<8xf32>
    %64 = vector.shape_cast %63 : vector<8xf32> to vector<8x1xf32>
    %65 = vector.broadcast %64 : vector<8x1xf32> to vector<8x8xf32>
    %66 = arith.subf %62, %65 : vector<8x8xf32>
    %67 = math.exp %66 : vector<8x8xf32>
    %cst_18 = arith.constant dense<0.000000e+00> : vector<8xf32>
    %68 = vector.multi_reduction <add>, %67, %cst_18 [1] : vector<8x8xf32> to vector<8xf32>
    %69 = vector.shape_cast %68 : vector<8xf32> to vector<8x1xf32>
    %70 = tpu.reciprocal %69 {approx = true} : vector<8x1xf32> -> vector<8x1xf32>
    %71 = vector.broadcast %70 : vector<8x1xf32> to vector<8x8xf32>
    %72 = arith.mulf %67, %71 : vector<8x8xf32>
    %73 = arith.truncf %72 : vector<8x8xf32> to vector<8x8xbf16>
    %cst_19 = arith.constant dense<0.000000e+00> : vector<8x16xf32>
    %74 = tpu.matmul %73, %60, %cst_19 {dimension_numbers = #tpu.dot_dimension_numbers<[1], [0], [0], [1], [0, 0, 1, 1], [], []>} : vector<8x8xbf16>, vector<8x16xbf16>, vector<8x16xf32> -> vector<8x16xf32>
    %75 = tpu.concatenate %54, %74 in 1 : vector<8x16xf32>, vector<8x16xf32> -> vector<8x32xf32>
    %76 = arith.truncf %75 : vector<8x32xf32> to vector<8x32xbf16>
    %c0_20 = arith.constant 0 : index
    %c0_21 = arith.constant 0 : index
    %77 = vector.load %arg4[%c0_20, %c0_21] : memref<32x32xbf16, #tpu.memory_space<vmem>>, vector<32x32xbf16>
    %cst_22 = arith.constant dense<0.000000e+00> : vector<8x32xf32>
    %78 = tpu.matmul %76, %77, %cst_22 {dimension_numbers = #tpu.dot_dimension_numbers<[1], [0], [0], [1], [0, 0, 1, 1], [], []>} : vector<8x32xbf16>, vector<32x32xbf16>, vector<8x32xf32> -> vector<8x32xf32>
    %79 = vector.shape_cast %5 : vector<32xf32> to vector<1x32xf32>
    %80 = vector.broadcast %79 : vector<1x32xf32> to vector<8x32xf32>
    %81 = arith.addf %78, %80 : vector<8x32xf32>
    %c0_23 = arith.constant 0 : index
    %c0_24 = arith.constant 0 : index
    %82 = vector.load %arg5[%c0_23, %c0_24] : memref<16x32xf32, #tpu.memory_space<vmem>>, vector<8x32xf32>
    tpu.vector_store %arg5[%c0_23, %c0_24], %81 {strides = array<i32>} : memref<16x32xf32, #tpu.memory_space<vmem>>, vector<8x32xf32>,
    %83 = vector.extract_strided_slice %33 {offsets = [8, 0], sizes = [8, 96], strides = [1, 1]} : vector<16x96xf32> to vector<8x96xf32>
    %84 = vector.extract_strided_slice %83 {offsets = [0, 0], sizes = [8, 16], strides = [1, 1]} : vector<8x96xf32> to vector<8x16xf32>
    %85 = arith.truncf %84 : vector<8x16xf32> to vector<8x16xbf16>
    %86 = vector.extract_strided_slice %83 {offsets = [0, 32], sizes = [8, 16], strides = [1, 1]} : vector<8x96xf32> to vector<8x16xf32>
    %87 = arith.truncf %86 : vector<8x16xf32> to vector<8x16xbf16>
    %88 = vector.extract_strided_slice %83 {offsets = [0, 64], sizes = [8, 16], strides = [1, 1]} : vector<8x96xf32> to vector<8x16xf32>
    %89 = arith.truncf %88 : vector<8x16xf32> to vector<8x16xbf16>
    %90 = tpu.transpose %87, [1, 0] : vector<8x16xbf16> -> vector<16x8xbf16>
    %cst_25 = arith.constant dense<0.000000e+00> : vector<8x8xf32>
    %91 = tpu.matmul %85, %90, %cst_25 {dimension_numbers = #tpu.dot_dimension_numbers<[1], [0], [0], [1], [0, 0, 1, 1], [], []>} : vector<8x16xbf16>, vector<16x8xbf16>, vector<8x8xf32> -> vector<8x8xf32>
    %cst_26 = arith.constant dense<0xFF800000> : vector<8xf32>
    %92 = vector.multi_reduction <maximumf>, %91, %cst_26 [1] : vector<8x8xf32> to vector<8xf32>
    %93 = vector.shape_cast %92 : vector<8xf32> to vector<8x1xf32>
    %94 = vector.broadcast %93 : vector<8x1xf32> to vector<8x8xf32>
    %95 = arith.subf %91, %94 : vector<8x8xf32>
    %96 = math.exp %95 : vector<8x8xf32>
    %cst_27 = arith.constant dense<0.000000e+00> : vector<8xf32>
    %97 = vector.multi_reduction <add>, %96, %cst_27 [1] : vector<8x8xf32> to vector<8xf32>
    %98 = vector.shape_cast %97 : vector<8xf32> to vector<8x1xf32>
    %99 = tpu.reciprocal %98 {approx = true} : vector<8x1xf32> -> vector<8x1xf32>
    %100 = vector.broadcast %99 : vector<8x1xf32> to vector<8x8xf32>
    %101 = arith.mulf %96, %100 : vector<8x8xf32>
    %102 = arith.truncf %101 : vector<8x8xf32> to vector<8x8xbf16>
    %cst_28 = arith.constant dense<0.000000e+00> : vector<8x16xf32>
    %103 = tpu.matmul %102, %89, %cst_28 {dimension_numbers = #tpu.dot_dimension_numbers<[1], [0], [0], [1], [0, 0, 1, 1], [], []>} : vector<8x8xbf16>, vector<8x16xbf16>, vector<8x16xf32> -> vector<8x16xf32>
    %104 = vector.extract_strided_slice %83 {offsets = [0, 16], sizes = [8, 16], strides = [1, 1]} : vector<8x96xf32> to vector<8x16xf32>
    %105 = arith.truncf %104 : vector<8x16xf32> to vector<8x16xbf16>
    %106 = vector.extract_strided_slice %83 {offsets = [0, 48], sizes = [8, 16], strides = [1, 1]} : vector<8x96xf32> to vector<8x16xf32>
    %107 = arith.truncf %106 : vector<8x16xf32> to vector<8x16xbf16>
    %108 = vector.extract_strided_slice %83 {offsets = [0, 80], sizes = [8, 16], strides = [1, 1]} : vector<8x96xf32> to vector<8x16xf32>
    %109 = arith.truncf %108 : vector<8x16xf32> to vector<8x16xbf16>
    %110 = tpu.transpose %107, [1, 0] : vector<8x16xbf16> -> vector<16x8xbf16>
    %cst_29 = arith.constant dense<0.000000e+00> : vector<8x8xf32>
    %111 = tpu.matmul %105, %110, %cst_29 {dimension_numbers = #tpu.dot_dimension_numbers<[1], [0], [0], [1], [0, 0, 1, 1], [], []>} : vector<8x16xbf16>, vector<16x8xbf16>, vector<8x8xf32> -> vector<8x8xf32>
    %cst_30 = arith.constant dense<0xFF800000> : vector<8xf32>
    %112 = vector.multi_reduction <maximumf>, %111, %cst_30 [1] : vector<8x8xf32> to vector<8xf32>
    %113 = vector.shape_cast %112 : vector<8xf32> to vector<8x1xf32>
    %114 = vector.broadcast %113 : vector<8x1xf32> to vector<8x8xf32>
    %115 = arith.subf %111, %114 : vector<8x8xf32>
    %116 = math.exp %115 : vector<8x8xf32>
    %cst_31 = arith.constant dense<0.000000e+00> : vector<8xf32>
    %117 = vector.multi_reduction <add>, %116, %cst_31 [1] : vector<8x8xf32> to vector<8xf32>
    %118 = vector.shape_cast %117 : vector<8xf32> to vector<8x1xf32>
    %119 = tpu.reciprocal %118 {approx = true} : vector<8x1xf32> -> vector<8x1xf32>
    %120 = vector.broadcast %119 : vector<8x1xf32> to vector<8x8xf32>
    %121 = arith.mulf %116, %120 : vector<8x8xf32>
    %122 = arith.truncf %121 : vector<8x8xf32> to vector<8x8xbf16>
    %cst_32 = arith.constant dense<0.000000e+00> : vector<8x16xf32>
    %123 = tpu.matmul %122, %109, %cst_32 {dimension_numbers = #tpu.dot_dimension_numbers<[1], [0], [0], [1], [0, 0, 1, 1], [], []>} : vector<8x8xbf16>, vector<8x16xbf16>, vector<8x16xf32> -> vector<8x16xf32>
    %124 = tpu.concatenate %103, %123 in 1 : vector<8x16xf32>, vector<8x16xf32> -> vector<8x32xf32>
    %125 = arith.truncf %124 : vector<8x32xf32> to vector<8x32xbf16>
    %c0_33 = arith.constant 0 : index
    %c0_34 = arith.constant 0 : index
    %126 = vector.load %arg4[%c0_33, %c0_34] : memref<32x32xbf16, #tpu.memory_space<vmem>>, vector<32x32xbf16>
    %cst_35 = arith.constant dense<0.000000e+00> : vector<8x32xf32>
    %127 = tpu.matmul %125, %126, %cst_35 {dimension_numbers = #tpu.dot_dimension_numbers<[1], [0], [0], [1], [0, 0, 1, 1], [], []>} : vector<8x32xbf16>, vector<32x32xbf16>, vector<8x32xf32> -> vector<8x32xf32>
    %128 = vector.shape_cast %5 : vector<32xf32> to vector<1x32xf32>
    %129 = vector.broadcast %128 : vector<1x32xf32> to vector<8x32xf32>
    %130 = arith.addf %127, %129 : vector<8x32xf32>
    %c8 = arith.constant 8 : index
    %c0_36 = arith.constant 0 : index
    %131 = vector.load %arg5[%c8, %c0_36] : memref<16x32xf32, #tpu.memory_space<vmem>>, vector<8x32xf32>
    tpu.vector_store %arg5[%c8, %c0_36], %130 {strides = array<i32>} : memref<16x32xf32, #tpu.memory_space<vmem>>, vector<8x32xf32>,
    return
  }
  func.func @transform_0(%arg0: i32) -> (i32, i32) {
    %c0_i32 = arith.constant 0 : i32
    %c0_i32_0 = arith.constant 0 : i32
    return %arg0, %c0_i32 : i32, i32
  }
  func.func @transform_1(%arg0: i32) -> (i32, i32) {
    %c0_i32 = arith.constant 0 : i32
    %c0_i32_0 = arith.constant 0 : i32
    %c0_i32_1 = arith.constant 0 : i32
    return %c0_i32, %c0_i32_0 : i32, i32
  }
  func.func @transform_2(%arg0: i32) -> (i32, i32) {
    %c0_i32 = arith.constant 0 : i32
    %c0_i32_0 = arith.constant 0 : i32
    %c0_i32_1 = arith.constant 0 : i32
    return %c0_i32, %c0_i32_0 : i32, i32
  }
  func.func @transform_3(%arg0: i32) -> (i32, i32) {
    %c0_i32 = arith.constant 0 : i32
    %c0_i32_0 = arith.constant 0 : i32
    %c0_i32_1 = arith.constant 0 : i32
    return %c0_i32, %c0_i32_0 : i32, i32
  }
  func.func @transform_4(%arg0: i32) -> (i32, i32) {
    %c0_i32 = arith.constant 0 : i32
    %c0_i32_0 = arith.constant 0 : i32
    return %arg0, %c0_i32 : i32, i32
  }
}

</mosaic_0001>

<llo_original>
// kernel: tpu_custom_call.1
$region0: #{tpu_custom_call.1}
  #allocation0 [shape = 'u32[]', space=smem, size = 0x4, offset = 0x4, fixed_abs, tag = 'smem constant byte address 0x4 - core index']
  #allocation1 [shape = 'u32[144,128]{1,0:T(1,128)}', space=vmem, size = 0x12000, scoped, tag = 'internal scratch']
  %s0 = inlined_call_operand.hbm [shape: f32[16,32], index: 0, kind: input, shape index: {}]
  %s1 = inlined_call_operand.hbm [shape: f32[3,32], index: 1, kind: input, shape index: {}]
  %s2 = inlined_call_operand.hbm [shape: bf16[32,96], index: 2, kind: input, shape index: {}]
  %s3 = inlined_call_operand.hbm [shape: bf16[32,32], index: 3, kind: input, shape index: {}]
  %s4 = inlined_call_operand.hbm [shape: f32[16,32], index: 4, kind: output, shape index: {}]
  %s5 = sld [smem:[#allocation0]]
  $region42: #{tpu_custom_call.1} parent=0
    _
  %s7 = ssub.s32 1, %s5
  %s8 = scalar_select 0, %s7, %s5
  $region1: #{tpu_custom_call.1} parent=0
    #allocation2 [shape = 'u8[8192]{0}', space=vmem, size = 0x2000, scoped, tag = 'input window, operand 0, single buffered']
    #allocation3 [shape = 's32[1]{0}', space=sflag, size = 0x4, scoped, tag = 'scoped memory for tpu_custom_call.1']
    #allocation4 [shape = 's32[1]{0}', space=sflag, size = 0x4, scoped, tag = 'scoped memory for tpu_custom_call.1']
    #allocation5 [shape = 'u8[2048]{0}', space=vmem, size = 0x800, scoped, tag = 'input window, operand 1, single buffered']
    #allocation6 [shape = 's32[1]{0}', space=sflag, size = 0x4, scoped, tag = 'scoped memory for tpu_custom_call.1']
    #allocation7 [shape = 'u8[8192]{0}', space=vmem, size = 0x2000, scoped, tag = 'input window, operand 2, single buffered']
    #allocation8 [shape = 'u8[8192]{0}', space=vmem, size = 0x2000, scoped, tag = 'input window, operand 3, single buffered']
    #allocation9 [shape = 's32[1]{0}', space=sflag, size = 0x4, scoped, tag = 'scoped memory for tpu_custom_call.1']
    #allocation10 [shape = 'u8[8192]{0}', space=vmem, size = 0x2000, scoped, tag = 'output window, operand 0, single buffered']
    %9 = vsyncpa [#allocation3], 0
    %10 = vsyncpa [#allocation6], 0
    %11 = vsyncpa [#allocation9], 0
    %12 = vsyncpa [#allocation4], 0
    // Predicated region
    $region2: #{tpu_custom_call.1} parent=1 // pred_check
      _
    $region3: #{tpu_custom_call.1} parent=1 // pred_check_branch
      %14 = sbr.rel (0) target = $region5
    $region4: #{tpu_custom_call.1} parent=1 // pred_region
      %s16 = ssub.s32 256, 256
      %17 = vsyncadd [#allocation3], %s16
      %s18 = sshll.u32 [#allocation2], 4
      %s19 = int_to_ptr.vmem [resolvable:$true] %s18
      %24 = dma.hbm_to_vmem [thread:$0]  %s0, 256, %s19, [#allocation3], 128, 128, 8
    $region5: #{tpu_custom_call.1} parent=1 // pred_fallthru
      _
    // Predicated region
    $region6: #{tpu_custom_call.1} parent=1 // pred_check
      _
    $region7: #{tpu_custom_call.1} parent=1 // pred_check_branch
      %26 = sbr.rel (0) target = $region9
    $region8: #{tpu_custom_call.1} parent=1 // pred_region
      %s28 = ssub.s32 64, 64
      %29 = vsyncadd [#allocation6], %s28
      %s31 = sshll.u32 [#allocation5], 4
      %s32 = int_to_ptr.vmem [resolvable:$true] %s31
      %34 = dma.hbm_to_vmem [thread:$0]  %s1, 64, %s32, [#allocation6]
    $region9: #{tpu_custom_call.1} parent=1 // pred_fallthru
      _
    // Predicated region
    $region10: #{tpu_custom_call.1} parent=1 // pred_check
      _
    $region11: #{tpu_custom_call.1} parent=1 // pred_check_branch
      %36 = sbr.rel (0) target = $region13
    $region12: #{tpu_custom_call.1} parent=1 // pred_region
      %s38 = ssub.s32 256, 256
      %39 = vsyncadd [#allocation6], %s38
      %s40 = sshll.u32 [#allocation7], 4
      %s41 = int_to_ptr.vmem [resolvable:$true] %s40
      %46 = dma.hbm_to_vmem [thread:$0]  %s2, 256, %s41, [#allocation6], 64, 64, 4
    $region13: #{tpu_custom_call.1} parent=1 // pred_fallthru
      _
    // Predicated region
    $region14: #{tpu_custom_call.1} parent=1 // pred_check
      _
    $region15: #{tpu_custom_call.1} parent=1 // pred_check_branch
      %48 = sbr.rel (0) target = $region17
    $region16: #{tpu_custom_call.1} parent=1 // pred_region
      %s50 = ssub.s32 256, 256
      %51 = vsyncadd [#allocation9], %s50
      %s52 = sshll.u32 [#allocation8], 4
      %s53 = int_to_ptr.vmem [resolvable:$true] %s52
      %58 = dma.hbm_to_vmem [thread:$0]  %s3, 256, %s53, [#allocation9], 64, 64, 4
    $region17: #{tpu_custom_call.1} parent=1 // pred_fallthru
      _
    // Predicated region
    $region18: #{tpu_custom_call.1} parent=1 // pred_check
      _
    $region19: #{tpu_custom_call.1} parent=1 // pred_check_branch
      %60 = sbr.rel (0) target = $region21
    $region20: #{tpu_custom_call.1} parent=1 // pred_region
      %61 = dma.done [#allocation3], 256
    $region21: #{tpu_custom_call.1} parent=1 // pred_fallthru
      _
    // Predicated region
    $region22: #{tpu_custom_call.1} parent=1 // pred_check
      _
    $region23: #{tpu_custom_call.1} parent=1 // pred_check_branch
      %63 = sbr.rel (0) target = $region25
    $region24: #{tpu_custom_call.1} parent=1 // pred_region
      %64 = dma.done [#allocation6], 64
    $region25: #{tpu_custom_call.1} parent=1 // pred_fallthru
      _
    // Predicated region
    $region26: #{tpu_custom_call.1} parent=1 // pred_check
      _
    $region27: #{tpu_custom_call.1} parent=1 // pred_check_branch
      %66 = sbr.rel (0) target = $region29
    $region28: #{tpu_custom_call.1} parent=1 // pred_region
      %67 = dma.done [#allocation6], 256
    $region29: #{tpu_custom_call.1} parent=1 // pred_fallthru
      _
    // Predicated region
    $region30: #{tpu_custom_call.1} parent=1 // pred_check
      _
    $region31: #{tpu_custom_call.1} parent=1 // pred_check_branch
      %69 = sbr.rel (0) target = $region33
    $region32: #{tpu_custom_call.1} parent=1 // pred_region
      %70 = dma.done [#allocation9], 256
    $region33: #{tpu_custom_call.1} parent=1 // pred_fallthru
      _
    %v72 = vld [vmem:[#allocation5] sm:$0x1]
    %v73 = vld [vmem:[#allocation5 + $0x1] sm:$0x1]
    %v74 = vld [vmem:[#allocation5 + $0x2] sm:$0x1]
    %v75 = vld [vmem:[#allocation2] sm:$0xff]
    %v76 = vld [vmem:[#allocation2 + $0x8] sm:$0xff]
    %vm77 = vcmask 261120
    %v78 = vsel %vm77, %v75, 0.0
    %79 = vadd.xlane.f32.xlu0 %v78
    %v80 = vpop.xlane.xlu0 %79
    %v81 = vsel %vm77, %v76, 0.0
    %82 = vadd.xlane.f32.xlu0 %v81
    %v83 = vpop.xlane.xlu0 %82
    %v84 = vrcp.pop 32.0
    %v85 = vmul.f32 %v80, %v84
    %v86 = vmul.f32 %v83, %v84
    %v87 = vsub.f32 %v75, %v85
    %v88 = vsub.f32 %v76, %v86
    %v89 = vmul.f32 %v87, %v87
    %v90 = vmul.f32 %v88, %v88
    %v91 = vsel %vm77, %v89, 0.0
    %92 = vadd.xlane.f32.xlu0 %v91
    %v93 = vpop.xlane.xlu0 %92
    %v94 = vsel %vm77, %v90, 0.0
    %95 = vadd.xlane.f32.xlu0 %v94
    %v96 = vpop.xlane.xlu0 %95
    %v97 = vmul.f32 %v93, %v84
    %v98 = vmul.f32 %v96, %v84
    %v99 = vadd.f32 %v97, 1e-05
    %v100 = vadd.f32 %v98, 1e-05
    %v101 = vrsqrt.pop %v99
    %v102 = vrsqrt.pop %v100
    %v103 = vmul.f32 %v87, %v101
    %v104 = vmul.f32 %v88, %v102
    %v105 = vlaneseq
    %v106 = vshrl.u32 %v105, 7
    %v107 = vsub.s32 0, %v106
    %v108 = vrot.slane %v72, %v107
    %v109 = vmul.f32 %v103, %v108
    %v110 = vmul.f32 %v104, %v108
    %v111 = vlaneseq
    %v112 = vshrl.u32 %v111, 7
    %v113 = vsub.s32 0, %v112
    %v114 = vrot.slane %v73, %v113
    %v115 = vadd.f32 %v109, %v114
    %v116 = vadd.f32 %v110, %v114
    %v117 = vpack.c.bf16 %v116, %v115
    %v118 = vld [vmem:[#allocation7] sm:$0xf]
    %v119 = vld [vmem:[#allocation7 + $0x4] sm:$0xf]
    %v120 = vld [vmem:[#allocation7 + $0x8] sm:$0xf]
    %v121 = vld [vmem:[#allocation7 + $0xc] sm:$0xf]
    %v126 = vunpack.c.l.b16 %v118
    %v127 = vunpack.c.l.b16 %v119
    %v128 = vunpack.c.l.b16 %v120
    %v129 = vunpack.c.l.b16 %v121
    %v130 = vpack.c.b16 %v127, %v126
    %v131 = vpack.c.b16 %v129, %v128
    %v135 = vsel %vm77, %v117, 0
    %137 = vmatprep.subr.bf16.mxu0 0
    %138 = vmatpush1.bf16.msra.mxu0 %v130
    %139 = vmatprep.subr.bf16.mxu0 0
    %140 = vmatpush1.bf16.msra.mxu0 %v131
    %141 = vmatprep.subr.bf16.mxu0 0
    %142 = vmatpush1.bf16.msra.mxu0 0
    %143 = vmatprep.subr.bf16.mxu0 0
    %144 = vmatpush1.bf16.msra.mxu0 0
    %145 = vmatprep.subr.bf16.mxu0 0
    %146 = vmatpush1.bf16.msra.mxu0 0
    %147 = vmatprep.subr.bf16.mxu0 0
    %148 = vmatpush1.bf16.msra.mxu0 0
    %149 = vmatprep.subr.bf16.mxu0 0
    %150 = vmatpush1.bf16.msra.mxu0 0
    %151 = vmatprep.subr.bf16.mxu0 0
    %152 = vmatpush1.bf16.msra.mxu0 0
    %153 = vmatprep.subr.bf16.mxu0 0
    %154 = vmatpush1.bf16.msra.mxu0 0
    %155 = vmatprep.subr.bf16.mxu0 0
    %156 = vmatpush1.bf16.msra.mxu0 0
    %157 = vmatprep.subr.bf16.mxu0 0
    %158 = vmatpush1.bf16.msra.mxu0 0
    %159 = vmatprep.subr.bf16.mxu0 0
    %160 = vmatpush1.bf16.msra.mxu0 0
    %161 = vmatprep.subr.bf16.mxu0 0
    %162 = vmatpush1.bf16.msra.mxu0 0
    %163 = vmatprep.subr.bf16.mxu0 0
    %164 = vmatpush1.bf16.msra.mxu0 0
    %165 = vmatprep.subr.bf16.mxu0 0
    %166 = vmatpush1.bf16.msra.mxu0 0
    %167 = vmatprep.subr.bf16.mxu0 0
    %168 = vmatpush1.bf16.msra.mxu0 0
    %169 = vmatprep.mubr.bf16.mxu0 0
    %170 = vmatmul.mubr.bf16.gmra.mrb[0].mxu0 %v135
    %v171 = vpop.f32.mrb[0].mxu0
    %v172 = vadd.f32 0.0, %v171
    %v173 = vpop.f32.mrb[0].mxu0
    %v174 = vpop.f32.mrb[0].mxu0
    %v175 = vadd.f32 0.0, %v174
    %v176 = vpop.f32.mrb[0].mxu0
    %177 = vdwg.mxu0
    %v178 = vpack.c.bf16 %v172, %v172
    %180 = vrot.lane.b32.xlu0 %v178, 96
    %v181 = vpop.permute.xlu0 %180
    %vm182 = vcmask 130048
    %v184 = vsel %vm182, %v178, 0
    %v187 = vsel %vm182, %v181, 0
    %189 = vmatprep.subr.bf16.mxu0 0
    %190 = vmatpush1.bf16.xpose.msra.mxu0 %v187
    %191 = vmatprep.subr.bf16.mxu0 0
    %192 = vmatpush1.bf16.xpose.msra.mxu0 0
    %193 = vmatprep.subr.bf16.mxu0 0
    %194 = vmatpush1.bf16.xpose.msra.mxu0 0
    %195 = vmatprep.subr.bf16.mxu0 0
    %196 = vmatpush1.bf16.xpose.msra.mxu0 0
    %197 = vmatprep.subr.bf16.mxu0 0
    %198 = vmatpush1.bf16.xpose.msra.mxu0 0
    %199 = vmatprep.subr.bf16.mxu0 0
    %200 = vmatpush1.bf16.xpose.msra.mxu0 0
    %201 = vmatprep.subr.bf16.mxu0 0
    %202 = vmatpush1.bf16.xpose.msra.mxu0 0
    %203 = vmatprep.subr.bf16.mxu0 0
    %204 = vmatpush1.bf16.xpose.msra.mxu0 0
    %205 = vmatprep.subr.bf16.mxu0 0
    %206 = vmatpush1.bf16.xpose.msra.mxu0 0
    %207 = vmatprep.subr.bf16.mxu0 0
    %208 = vmatpush1.bf16.xpose.msra.mxu0 0
    %209 = vmatprep.subr.bf16.mxu0 0
    %210 = vmatpush1.bf16.xpose.msra.mxu0 0
    %211 = vmatprep.subr.bf16.mxu0 0
    %212 = vmatpush1.bf16.xpose.msra.mxu0 0
    %213 = vmatprep.subr.bf16.mxu0 0
    %214 = vmatpush1.bf16.xpose.msra.mxu0 0
    %215 = vmatprep.subr.bf16.mxu0 0
    %216 = vmatpush1.bf16.xpose.msra.mxu0 0
    %217 = vmatprep.subr.bf16.mxu0 0
    %218 = vmatpush1.bf16.xpose.msra.mxu0 0
    %219 = vmatprep.subr.bf16.mxu0 0
    %220 = vmatpush1.bf16.xpose.msra.mxu0 0
    %221 = vmatprep.mubr.bf16.mxu0 0
    %222 = vmatmul.mubr.bf16.gmra.mrb[0].mxu0 %v184
    %v223 = vpop.f32.mrb[0].mxu0
    %v224 = vadd.f32 0.0, %v223
    %v225 = vpop.f32.mrb[0].mxu0
    %v226 = vpop.f32.mrb[0].mxu0
    %v227 = vpop.f32.mrb[0].mxu0
    %228 = vdwg.mxu0
    %vm229 = vcmask 64512
    %v230 = vsel %vm229, %v224, -inf
    %231 = vmax.xlane.f32.xlu0 %v230
    %v232 = vpop.xlane.xlu0 %231
    %v233 = vsub.f32 %v224, %v232
    %v234 = vmul.f32 %v233, 1.442695
    %v235 = vpow.pop %v234
    %v236 = vsel %vm229, %v235, 0.0
    %237 = vadd.xlane.f32.xlu0 %v236
    %v238 = vpop.xlane.xlu0 %237
    %v239 = vrcp.pop %v238
    %v240 = vmul.f32 %v235, %v239
    %v241 = vpack.c.bf16 %v240, %v240
    %242 = vrot.lane.b32.xlu0 %v178, 64
    %v243 = vpop.permute.xlu0 %242
    %v245 = vsel %vm229, %v241, 0
    %vm247 = vcmask 1043456
    %v249 = vsel %vm247, %v243, 0
    %251 = vmatprep.subr.bf16.mxu0 0
    %252 = vmatpush1.bf16.msra.mxu0 %v249
    %253 = vmatprep.subr.bf16.mxu0 0
    %254 = vmatpush1.bf16.msra.mxu0 0
    %255 = vmatprep.subr.bf16.mxu0 0
    %256 = vmatpush1.bf16.msra.mxu0 0
    %257 = vmatprep.subr.bf16.mxu0 0
    %258 = vmatpush1.bf16.msra.mxu0 0
    %259 = vmatprep.subr.bf16.mxu0 0
    %260 = vmatpush1.bf16.msra.mxu0 0
    %261 = vmatprep.subr.bf16.mxu0 0
    %262 = vmatpush1.bf16.msra.mxu0 0
    %263 = vmatprep.subr.bf16.mxu0 0
    %264 = vmatpush1.bf16.msra.mxu0 0
    %265 = vmatprep.subr.bf16.mxu0 0
    %266 = vmatpush1.bf16.msra.mxu0 0
    %267 = vmatprep.subr.bf16.mxu0 0
    %268 = vmatpush1.bf16.msra.mxu0 0
    %269 = vmatprep.subr.bf16.mxu0 0
    %270 = vmatpush1.bf16.msra.mxu0 0
    %271 = vmatprep.subr.bf16.mxu0 0
    %272 = vmatpush1.bf16.msra.mxu0 0
    %273 = vmatprep.subr.bf16.mxu0 0
    %274 = vmatpush1.bf16.msra.mxu0 0
    %275 = vmatprep.subr.bf16.mxu0 0
    %276 = vmatpush1.bf16.msra.mxu0 0
    %277 = vmatprep.subr.bf16.mxu0 0
    %278 = vmatpush1.bf16.msra.mxu0 0
    %279 = vmatprep.subr.bf16.mxu0 0
    %280 = vmatpush1.bf16.msra.mxu0 0
    %281 = vmatprep.subr.bf16.mxu0 0
    %282 = vmatpush1.bf16.msra.mxu0 0
    %283 = vmatprep.mubr.bf16.mxu0 0
    %284 = vmatmul.mubr.bf16.gmra.mrb[0].mxu0 %v245
    %v285 = vpop.f32.mrb[0].mxu0
    %v286 = vadd.f32 0.0, %v285
    %v287 = vpop.f32.mrb[0].mxu0
    %v288 = vpop.f32.mrb[0].mxu0
    %v289 = vpop.f32.mrb[0].mxu0
    %290 = vdwg.mxu0
    %291 = vrot.lane.b32.xlu0 %v178, 112
    %v292 = vpop.permute.xlu0 %291
    %293 = vrot.lane.b32.xlu0 %v178, 80
    %v294 = vpop.permute.xlu0 %293
    %v296 = vsel %vm182, %v292, 0
    %v299 = vsel %vm182, %v294, 0
    %301 = vmatprep.subr.bf16.mxu0 0
    %302 = vmatpush1.bf16.xpose.msra.mxu0 %v299
    %303 = vmatprep.subr.bf16.mxu0 0
    %304 = vmatpush1.bf16.xpose.msra.mxu0 0
    %305 = vmatprep.subr.bf16.mxu0 0
    %306 = vmatpush1.bf16.xpose.msra.mxu0 0
    %307 = vmatprep.subr.bf16.mxu0 0
    %308 = vmatpush1.bf16.xpose.msra.mxu0 0
    %309 = vmatprep.subr.bf16.mxu0 0
    %310 = vmatpush1.bf16.xpose.msra.mxu0 0
    %311 = vmatprep.subr.bf16.mxu0 0
    %312 = vmatpush1.bf16.xpose.msra.mxu0 0
    %313 = vmatprep.subr.bf16.mxu0 0
    %314 = vmatpush1.bf16.xpose.msra.mxu0 0
    %315 = vmatprep.subr.bf16.mxu0 0
    %316 = vmatpush1.bf16.xpose.msra.mxu0 0
    %317 = vmatprep.subr.bf16.mxu0 0
    %318 = vmatpush1.bf16.xpose.msra.mxu0 0
    %319 = vmatprep.subr.bf16.mxu0 0
    %320 = vmatpush1.bf16.xpose.msra.mxu0 0
    %321 = vmatprep.subr.bf16.mxu0 0
    %322 = vmatpush1.bf16.xpose.msra.mxu0 0
    %323 = vmatprep.subr.bf16.mxu0 0
    %324 = vmatpush1.bf16.xpose.msra.mxu0 0
    %325 = vmatprep.subr.bf16.mxu0 0
    %326 = vmatpush1.bf16.xpose.msra.mxu0 0
    %327 = vmatprep.subr.bf16.mxu0 0
    %328 = vmatpush1.bf16.xpose.msra.mxu0 0
    %329 = vmatprep.subr.bf16.mxu0 0
    %330 = vmatpush1.bf16.xpose.msra.mxu0 0
    %331 = vmatprep.subr.bf16.mxu0 0
    %332 = vmatpush1.bf16.xpose.msra.mxu0 0
    %333 = vmatprep.mubr.bf16.mxu0 0
    %334 = vmatmul.mubr.bf16.gmra.mrb[0].mxu0 %v296
    %v335 = vpop.f32.mrb[0].mxu0
    %v336 = vadd.f32 0.0, %v335
    %v337 = vpop.f32.mrb[0].mxu0
    %v338 = vpop.f32.mrb[0].mxu0
    %v339 = vpop.f32.mrb[0].mxu0
    %340 = vdwg.mxu0
    %v341 = vsel %vm229, %v336, -inf
    %342 = vmax.xlane.f32.xlu0 %v341
    %v343 = vpop.xlane.xlu0 %342
    %v344 = vsub.f32 %v336, %v343
    %v345 = vmul.f32 %v344, 1.442695
    %v346 = vpow.pop %v345
    %v347 = vsel %vm229, %v346, 0.0
    %348 = vadd.xlane.f32.xlu0 %v347
    %v349 = vpop.xlane.xlu0 %348
    %v350 = vrcp.pop %v349
    %v351 = vmul.f32 %v346, %v350
    %v352 = vpack.c.bf16 %v351, %v351
    %353 = vrot.lane.b32.xlu0 %v178, 48
    %v354 = vpop.permute.xlu0 %353
    %v356 = vsel %vm229, %v352, 0
    %v359 = vsel %vm247, %v354, 0
    %361 = vmatprep.subr.bf16.mxu0 0
    %362 = vmatpush1.bf16.msra.mxu0 %v359
    %363 = vmatprep.subr.bf16.mxu0 0
    %364 = vmatpush1.bf16.msra.mxu0 0
    %365 = vmatprep.subr.bf16.mxu0 0
    %366 = vmatpush1.bf16.msra.mxu0 0
    %367 = vmatprep.subr.bf16.mxu0 0
    %368 = vmatpush1.bf16.msra.mxu0 0
    %369 = vmatprep.subr.bf16.mxu0 0
    %370 = vmatpush1.bf16.msra.mxu0 0
    %371 = vmatprep.subr.bf16.mxu0 0
    %372 = vmatpush1.bf16.msra.mxu0 0
    %373 = vmatprep.subr.bf16.mxu0 0
    %374 = vmatpush1.bf16.msra.mxu0 0
    %375 = vmatprep.subr.bf16.mxu0 0
    %376 = vmatpush1.bf16.msra.mxu0 0
    %377 = vmatprep.subr.bf16.mxu0 0
    %378 = vmatpush1.bf16.msra.mxu0 0
    %379 = vmatprep.subr.bf16.mxu0 0
    %380 = vmatpush1.bf16.msra.mxu0 0
    %381 = vmatprep.subr.bf16.mxu0 0
    %382 = vmatpush1.bf16.msra.mxu0 0
    %383 = vmatprep.subr.bf16.mxu0 0
    %384 = vmatpush1.bf16.msra.mxu0 0
    %385 = vmatprep.subr.bf16.mxu0 0
    %386 = vmatpush1.bf16.msra.mxu0 0
    %387 = vmatprep.subr.bf16.mxu0 0
    %388 = vmatpush1.bf16.msra.mxu0 0
    %389 = vmatprep.subr.bf16.mxu0 0
    %390 = vmatpush1.bf16.msra.mxu0 0
    %391 = vmatprep.subr.bf16.mxu0 0
    %392 = vmatpush1.bf16.msra.mxu0 0
    %393 = vmatprep.mubr.bf16.mxu0 0
    %394 = vmatmul.mubr.bf16.gmra.mrb[0].mxu0 %v356
    %v395 = vpop.f32.mrb[0].mxu0
    %v396 = vadd.f32 0.0, %v395
    %v397 = vpop.f32.mrb[0].mxu0
    %v398 = vpop.f32.mrb[0].mxu0
    %v399 = vpop.f32.mrb[0].mxu0
    %400 = vdwg.mxu0
    %402 = vrot.lane.b32.xlu0 %v396, 16
    %v403 = vpop.permute.xlu0 %402
    %v405 = vsel %vm182, %v286, %v403
    %v406 = vpack.c.bf16 %v405, %v405
    %v407 = vld [vmem:[#allocation8] sm:$0xf]
    %v408 = vld [vmem:[#allocation8 + $0x4] sm:$0xf]
    %v409 = vld [vmem:[#allocation8 + $0x8] sm:$0xf]
    %v410 = vld [vmem:[#allocation8 + $0xc] sm:$0xf]
    %v411 = vlaneseq
    %v412 = vshrl.u32 %v411, 7
    %v413 = vsub.s32 0, %v412
    %v414 = vrot.slane %v74, %v413
    %v419 = vunpack.c.l.b16 %v407
    %v420 = vunpack.c.l.b16 %v408
    %v421 = vunpack.c.l.b16 %v409
    %v422 = vunpack.c.l.b16 %v410
    %v423 = vpack.c.b16 %v420, %v419
    %v424 = vpack.c.b16 %v422, %v421
    %v428 = vsel %vm77, %v406, 0
    %430 = vmatprep.subr.bf16.mxu0 0
    %431 = vmatpush1.bf16.msra.mxu0 %v423
    %432 = vmatprep.subr.bf16.mxu0 0
    %433 = vmatpush1.bf16.msra.mxu0 %v424
    %434 = vmatprep.subr.bf16.mxu0 0
    %435 = vmatpush1.bf16.msra.mxu0 0
    %436 = vmatprep.subr.bf16.mxu0 0
    %437 = vmatpush1.bf16.msra.mxu0 0
    %438 = vmatprep.subr.bf16.mxu0 0
    %439 = vmatpush1.bf16.msra.mxu0 0
    %440 = vmatprep.subr.bf16.mxu0 0
    %441 = vmatpush1.bf16.msra.mxu0 0
    %442 = vmatprep.subr.bf16.mxu0 0
    %443 = vmatpush1.bf16.msra.mxu0 0
    %444 = vmatprep.subr.bf16.mxu0 0
    %445 = vmatpush1.bf16.msra.mxu0 0
    %446 = vmatprep.subr.bf16.mxu0 0
    %447 = vmatpush1.bf16.msra.mxu0 0
    %448 = vmatprep.subr.bf16.mxu0 0
    %449 = vmatpush1.bf16.msra.mxu0 0
    %450 = vmatprep.subr.bf16.mxu0 0
    %451 = vmatpush1.bf16.msra.mxu0 0
    %452 = vmatprep.subr.bf16.mxu0 0
    %453 = vmatpush1.bf16.msra.mxu0 0
    %454 = vmatprep.subr.bf16.mxu0 0
    %455 = vmatpush1.bf16.msra.mxu0 0
    %456 = vmatprep.subr.bf16.mxu0 0
    %457 = vmatpush1.bf16.msra.mxu0 0
    %458 = vmatprep.subr.bf16.mxu0 0
    %459 = vmatpush1.bf16.msra.mxu0 0
    %460 = vmatprep.subr.bf16.mxu0 0
    %461 = vmatpush1.bf16.msra.mxu0 0
    %462 = vmatprep.mubr.bf16.mxu0 0
    %463 = vmatmul.mubr.bf16.gmra.mrb[0].mxu0 %v428
    %v464 = vpop.f32.mrb[0].mxu0
    %v465 = vadd.f32 %v414, %v464
    %v466 = vpop.f32.mrb[0].mxu0
    %v467 = vpop.f32.mrb[0].mxu0
    %v468 = vpop.f32.mrb[0].mxu0
    %469 = vdwg.mxu0
    %470 = vst.msk [vmem:[#allocation10] sm:$0xff] %vm77, %v465
    %v471 = vpack.c.bf16 %v175, %v175
    %473 = vrot.lane.b32.xlu0 %v471, 96
    %v474 = vpop.permute.xlu0 %473
    %v476 = vsel %vm182, %v471, 0
    %v479 = vsel %vm182, %v474, 0
    %481 = vmatprep.subr.bf16.mxu0 0
    %482 = vmatpush1.bf16.xpose.msra.mxu0 %v479
    %483 = vmatprep.subr.bf16.mxu0 0
    %484 = vmatpush1.bf16.xpose.msra.mxu0 0
    %485 = vmatprep.subr.bf16.mxu0 0
    %486 = vmatpush1.bf16.xpose.msra.mxu0 0
    %487 = vmatprep.subr.bf16.mxu0 0
    %488 = vmatpush1.bf16.xpose.msra.mxu0 0
    %489 = vmatprep.subr.bf16.mxu0 0
    %490 = vmatpush1.bf16.xpose.msra.mxu0 0
    %491 = vmatprep.subr.bf16.mxu0 0
    %492 = vmatpush1.bf16.xpose.msra.mxu0 0
    %493 = vmatprep.subr.bf16.mxu0 0
    %494 = vmatpush1.bf16.xpose.msra.mxu0 0
    %495 = vmatprep.subr.bf16.mxu0 0
    %496 = vmatpush1.bf16.xpose.msra.mxu0 0
    %497 = vmatprep.subr.bf16.mxu0 0
    %498 = vmatpush1.bf16.xpose.msra.mxu0 0
    %499 = vmatprep.subr.bf16.mxu0 0
    %500 = vmatpush1.bf16.xpose.msra.mxu0 0
    %501 = vmatprep.subr.bf16.mxu0 0
    %502 = vmatpush1.bf16.xpose.msra.mxu0 0
    %503 = vmatprep.subr.bf16.mxu0 0
    %504 = vmatpush1.bf16.xpose.msra.mxu0 0
    %505 = vmatprep.subr.bf16.mxu0 0
    %506 = vmatpush1.bf16.xpose.msra.mxu0 0
    %507 = vmatprep.subr.bf16.mxu0 0
    %508 = vmatpush1.bf16.xpose.msra.mxu0 0
    %509 = vmatprep.subr.bf16.mxu0 0
    %510 = vmatpush1.bf16.xpose.msra.mxu0 0
    %511 = vmatprep.subr.bf16.mxu0 0
    %512 = vmatpush1.bf16.xpose.msra.mxu0 0
    %513 = vmatprep.mubr.bf16.mxu0 0
    %514 = vmatmul.mubr.bf16.gmra.mrb[0].mxu0 %v476
    %v515 = vpop.f32.mrb[0].mxu0
    %v516 = vadd.f32 0.0, %v515
    %v517 = vpop.f32.mrb[0].mxu0
    %v518 = vpop.f32.mrb[0].mxu0
    %v519 = vpop.f32.mrb[0].mxu0
    %520 = vdwg.mxu0
    %v521 = vsel %vm229, %v516, -inf
    %522 = vmax.xlane.f32.xlu0 %v521
    %v523 = vpop.xlane.xlu0 %522
    %v524 = vsub.f32 %v516, %v523
    %v525 = vmul.f32 %v524, 1.442695
    %v526 = vpow.pop %v525
    %v527 = vsel %vm229, %v526, 0.0
    %528 = vadd.xlane.f32.xlu0 %v527
    %v529 = vpop.xlane.xlu0 %528
    %v530 = vrcp.pop %v529
    %v531 = vmul.f32 %v526, %v530
    %v532 = vpack.c.bf16 %v531, %v531
    %533 = vrot.lane.b32.xlu0 %v471, 64
    %v534 = vpop.permute.xlu0 %533
    %v536 = vsel %vm229, %v532, 0
    %v539 = vsel %vm247, %v534, 0
    %541 = vmatprep.subr.bf16.mxu0 0
    %542 = vmatpush1.bf16.msra.mxu0 %v539
    %543 = vmatprep.subr.bf16.mxu0 0
    %544 = vmatpush1.bf16.msra.mxu0 0
    %545 = vmatprep.subr.bf16.mxu0 0
    %546 = vmatpush1.bf16.msra.mxu0 0
    %547 = vmatprep.subr.bf16.mxu0 0
    %548 = vmatpush1.bf16.msra.mxu0 0
    %549 = vmatprep.subr.bf16.mxu0 0
    %550 = vmatpush1.bf16.msra.mxu0 0
    %551 = vmatprep.subr.bf16.mxu0 0
    %552 = vmatpush1.bf16.msra.mxu0 0
    %553 = vmatprep.subr.bf16.mxu0 0
    %554 = vmatpush1.bf16.msra.mxu0 0
    %555 = vmatprep.subr.bf16.mxu0 0
    %556 = vmatpush1.bf16.msra.mxu0 0
    %557 = vmatprep.subr.bf16.mxu0 0
    %558 = vmatpush1.bf16.msra.mxu0 0
    %559 = vmatprep.subr.bf16.mxu0 0
    %560 = vmatpush1.bf16.msra.mxu0 0
    %561 = vmatprep.subr.bf16.mxu0 0
    %562 = vmatpush1.bf16.msra.mxu0 0
    %563 = vmatprep.subr.bf16.mxu0 0
    %564 = vmatpush1.bf16.msra.mxu0 0
    %565 = vmatprep.subr.bf16.mxu0 0
    %566 = vmatpush1.bf16.msra.mxu0 0
    %567 = vmatprep.subr.bf16.mxu0 0
    %568 = vmatpush1.bf16.msra.mxu0 0
    %569 = vmatprep.subr.bf16.mxu0 0
    %570 = vmatpush1.bf16.msra.mxu0 0
    %571 = vmatprep.subr.bf16.mxu0 0
    %572 = vmatpush1.bf16.msra.mxu0 0
    %573 = vmatprep.mubr.bf16.mxu0 0
    %574 = vmatmul.mubr.bf16.gmra.mrb[0].mxu0 %v536
    %v575 = vpop.f32.mrb[0].mxu0
    %v576 = vadd.f32 0.0, %v575
    %v577 = vpop.f32.mrb[0].mxu0
    %v578 = vpop.f32.mrb[0].mxu0
    %v579 = vpop.f32.mrb[0].mxu0
    %580 = vdwg.mxu0
    %581 = vrot.lane.b32.xlu0 %v471, 112
    %v582 = vpop.permute.xlu0 %581
    %583 = vrot.lane.b32.xlu0 %v471, 80
    %v584 = vpop.permute.xlu0 %583
    %v586 = vsel %vm182, %v582, 0
    %v589 = vsel %vm182, %v584, 0
    %591 = vmatprep.subr.bf16.mxu0 0
    %592 = vmatpush1.bf16.xpose.msra.mxu0 %v589
    %593 = vmatprep.subr.bf16.mxu0 0
    %594 = vmatpush1.bf16.xpose.msra.mxu0 0
    %595 = vmatprep.subr.bf16.mxu0 0
    %596 = vmatpush1.bf16.xpose.msra.mxu0 0
    %597 = vmatprep.subr.bf16.mxu0 0
    %598 = vmatpush1.bf16.xpose.msra.mxu0 0
    %599 = vmatprep.subr.bf16.mxu0 0
    %600 = vmatpush1.bf16.xpose.msra.mxu0 0
    %601 = vmatprep.subr.bf16.mxu0 0
    %602 = vmatpush1.bf16.xpose.msra.mxu0 0
    %603 = vmatprep.subr.bf16.mxu0 0
    %604 = vmatpush1.bf16.xpose.msra.mxu0 0
    %605 = vmatprep.subr.bf16.mxu0 0
    %606 = vmatpush1.bf16.xpose.msra.mxu0 0
    %607 = vmatprep.subr.bf16.mxu0 0
    %608 = vmatpush1.bf16.xpose.msra.mxu0 0
    %609 = vmatprep.subr.bf16.mxu0 0
    %610 = vmatpush1.bf16.xpose.msra.mxu0 0
    %611 = vmatprep.subr.bf16.mxu0 0
    %612 = vmatpush1.bf16.xpose.msra.mxu0 0
    %613 = vmatprep.subr.bf16.mxu0 0
    %614 = vmatpush1.bf16.xpose.msra.mxu0 0
    %615 = vmatprep.subr.bf16.mxu0 0
    %616 = vmatpush1.bf16.xpose.msra.mxu0 0
    %617 = vmatprep.subr.bf16.mxu0 0
    %618 = vmatpush1.bf16.xpose.msra.mxu0 0
    %619 = vmatprep.subr.bf16.mxu0 0
    %620 = vmatpush1.bf16.xpose.msra.mxu0 0
    %621 = vmatprep.subr.bf16.mxu0 0
    %622 = vmatpush1.bf16.xpose.msra.mxu0 0
    %623 = vmatprep.mubr.bf16.mxu0 0
    %624 = vmatmul.mubr.bf16.gmra.mrb[0].mxu0 %v586
    %v625 = vpop.f32.mrb[0].mxu0
    %v626 = vadd.f32 0.0, %v625
    %v627 = vpop.f32.mrb[0].mxu0
    %v628 = vpop.f32.mrb[0].mxu0
    %v629 = vpop.f32.mrb[0].mxu0
    %630 = vdwg.mxu0
    %v631 = vsel %vm229, %v626, -inf
    %632 = vmax.xlane.f32.xlu0 %v631
    %v633 = vpop.xlane.xlu0 %632
    %v634 = vsub.f32 %v626, %v633
    %v635 = vmul.f32 %v634, 1.442695
    %v636 = vpow.pop %v635
    %v637 = vsel %vm229, %v636, 0.0
    %638 = vadd.xlane.f32.xlu0 %v637
    %v639 = vpop.xlane.xlu0 %638
    %v640 = vrcp.pop %v639
    %v641 = vmul.f32 %v636, %v640
    %v642 = vpack.c.bf16 %v641, %v641
    %643 = vrot.lane.b32.xlu0 %v471, 48
    %v644 = vpop.permute.xlu0 %643
    %v646 = vsel %vm229, %v642, 0
    %v649 = vsel %vm247, %v644, 0
    %651 = vmatprep.subr.bf16.mxu0 0
    %652 = vmatpush1.bf16.msra.mxu0 %v649
    %653 = vmatprep.subr.bf16.mxu0 0
    %654 = vmatpush1.bf16.msra.mxu0 0
    %655 = vmatprep.subr.bf16.mxu0 0
    %656 = vmatpush1.bf16.msra.mxu0 0
    %657 = vmatprep.subr.bf16.mxu0 0
    %658 = vmatpush1.bf16.msra.mxu0 0
    %659 = vmatprep.subr.bf16.mxu0 0
    %660 = vmatpush1.bf16.msra.mxu0 0
    %661 = vmatprep.subr.bf16.mxu0 0
    %662 = vmatpush1.bf16.msra.mxu0 0
    %663 = vmatprep.subr.bf16.mxu0 0
    %664 = vmatpush1.bf16.msra.mxu0 0
    %665 = vmatprep.subr.bf16.mxu0 0
    %666 = vmatpush1.bf16.msra.mxu0 0
    %667 = vmatprep.subr.bf16.mxu0 0
    %668 = vmatpush1.bf16.msra.mxu0 0
    %669 = vmatprep.subr.bf16.mxu0 0
    %670 = vmatpush1.bf16.msra.mxu0 0
    %671 = vmatprep.subr.bf16.mxu0 0
    %672 = vmatpush1.bf16.msra.mxu0 0
    %673 = vmatprep.subr.bf16.mxu0 0
    %674 = vmatpush1.bf16.msra.mxu0 0
    %675 = vmatprep.subr.bf16.mxu0 0
    %676 = vmatpush1.bf16.msra.mxu0 0
    %677 = vmatprep.subr.bf16.mxu0 0
    %678 = vmatpush1.bf16.msra.mxu0 0
    %679 = vmatprep.subr.bf16.mxu0 0
    %680 = vmatpush1.bf16.msra.mxu0 0
    %681 = vmatprep.subr.bf16.mxu0 0
    %682 = vmatpush1.bf16.msra.mxu0 0
    %683 = vmatprep.mubr.bf16.mxu0 0
    %684 = vmatmul.mubr.bf16.gmra.mrb[0].mxu0 %v646
    %v685 = vpop.f32.mrb[0].mxu0
    %v686 = vadd.f32 0.0, %v685
    %v687 = vpop.f32.mrb[0].mxu0
    %v688 = vpop.f32.mrb[0].mxu0
    %v689 = vpop.f32.mrb[0].mxu0
    %690 = vdwg.mxu0
    %692 = vrot.lane.b32.xlu0 %v686, 16
    %v693 = vpop.permute.xlu0 %692
    %v695 = vsel %vm182, %v576, %v693
    %v696 = vpack.c.bf16 %v695, %v695
    %v697 = vld [vmem:[#allocation8] sm:$0xf]
    %v698 = vld [vmem:[#allocation8 + $0x4] sm:$0xf]
    %v699 = vld [vmem:[#allocation8 + $0x8] sm:$0xf]
    %v700 = vld [vmem:[#allocation8 + $0xc] sm:$0xf]
    %v705 = vunpack.c.l.b16 %v697
    %v706 = vunpack.c.l.b16 %v698
    %v707 = vunpack.c.l.b16 %v699
    %v708 = vunpack.c.l.b16 %v700
    %v709 = vpack.c.b16 %v706, %v705
    %v710 = vpack.c.b16 %v708, %v707
    %v714 = vsel %vm77, %v696, 0
    %716 = vmatprep.subr.bf16.mxu0 0
    %717 = vmatpush1.bf16.msra.mxu0 %v709
    %718 = vmatprep.subr.bf16.mxu0 0
    %719 = vmatpush1.bf16.msra.mxu0 %v710
    %720 = vmatprep.subr.bf16.mxu0 0
    %721 = vmatpush1.bf16.msra.mxu0 0
    %722 = vmatprep.subr.bf16.mxu0 0
    %723 = vmatpush1.bf16.msra.mxu0 0
    %724 = vmatprep.subr.bf16.mxu0 0
    %725 = vmatpush1.bf16.msra.mxu0 0
    %726 = vmatprep.subr.bf16.mxu0 0
    %727 = vmatpush1.bf16.msra.mxu0 0
    %728 = vmatprep.subr.bf16.mxu0 0
    %729 = vmatpush1.bf16.msra.mxu0 0
    %730 = vmatprep.subr.bf16.mxu0 0
    %731 = vmatpush1.bf16.msra.mxu0 0
    %732 = vmatprep.subr.bf16.mxu0 0
    %733 = vmatpush1.bf16.msra.mxu0 0
    %734 = vmatprep.subr.bf16.mxu0 0
    %735 = vmatpush1.bf16.msra.mxu0 0
    %736 = vmatprep.subr.bf16.mxu0 0
    %737 = vmatpush1.bf16.msra.mxu0 0
    %738 = vmatprep.subr.bf16.mxu0 0
    %739 = vmatpush1.bf16.msra.mxu0 0
    %740 = vmatprep.subr.bf16.mxu0 0
    %741 = vmatpush1.bf16.msra.mxu0 0
    %742 = vmatprep.subr.bf16.mxu0 0
    %743 = vmatpush1.bf16.msra.mxu0 0
    %744 = vmatprep.subr.bf16.mxu0 0
    %745 = vmatpush1.bf16.msra.mxu0 0
    %746 = vmatprep.subr.bf16.mxu0 0
    %747 = vmatpush1.bf16.msra.mxu0 0
    %748 = vmatprep.mubr.bf16.mxu0 0
    %749 = vmatmul.mubr.bf16.gmra.mrb[0].mxu0 %v714
    %v750 = vpop.f32.mrb[0].mxu0
    %v751 = vadd.f32 %v414, %v750
    %v752 = vpop.f32.mrb[0].mxu0
    %v753 = vpop.f32.mrb[0].mxu0
    %v754 = vpop.f32.mrb[0].mxu0
    %755 = vdwg.mxu0
    %756 = vst.msk [vmem:[#allocation10 + $0x8] sm:$0xff] %vm77, %v751
    // Predicated region
    $region34: #{tpu_custom_call.1} parent=1 // pred_check
      _
    $region35: #{tpu_custom_call.1} parent=1 // pred_check_branch
      %758 = sbr.rel (0) target = $region37
    $region36: #{tpu_custom_call.1} parent=1 // pred_region
      %s760 = ssub.s32 256, 256
      %761 = vsyncadd [#allocation4], %s760
      %s762 = sshll.u32 [#allocation10], 4
      %s763 = int_to_ptr.vmem [resolvable:$true] %s762
      %768 = dma.vmem_to_hbm [thread:$0]  %s763, 256, %s4, [#allocation4], 128, 128, 8
    $region37: #{tpu_custom_call.1} parent=1 // pred_fallthru
      _
    // Predicated region
    $region38: #{tpu_custom_call.1} parent=1 // pred_check
      _
    $region39: #{tpu_custom_call.1} parent=1 // pred_check_branch
      %770 = sbr.rel (0) target = $region41
    $region40: #{tpu_custom_call.1} parent=1 // pred_region
      %771 = dma.done [#allocation4], 256
    $region41: #{tpu_custom_call.1} parent=1 // pred_fallthru
      _
    %772 = vsyncpa [#allocation3], 1
    %773 = vsyncpa [#allocation6], 1
    %774 = vsyncpa [#allocation9], 1
    %775 = vsyncpa [#allocation4], 1

</llo_original>
